<compile_context>
chip_gen: v7x
topology: tpu7x:2x2x1
jax: 0.10.0
libtpu: 0.0.40
codegen_flags: <defaults>
</compile_context>

<pallas_src>
import functools

import jax
import jax.numpy as jnp
from jax import lax
from jax.experimental import pallas as pl
from jax.experimental.pallas import tpu as pltpu


def _resblock_kernel(x_ref, t1_ref, s1_ref, b1_ref, t2_ref, s2_ref, b2_ref,
                     o_ref, *, H, WC):
    """Fused ResBlock for one batch element.

    x_ref:          (1, H, W*C)   lane-dense activation slab
    t1_ref/t2_ref:  (3, W*C, W*C) banded conv weights (one matrix per kernel row)
    s*_ref/b*_ref:  (1, W*C)      folded BN (+conv bias) affine, tiled across W
    o_ref:          (1, H, W*C)
    """
    x = x_ref[0].astype(jnp.float32)                    # (H, W*C)
    zero_row = jnp.zeros((1, WC), jnp.float32)

    def conv3x3(src, t_ref):
        # Height halo (pad=1) via sublane shifts with zero fill.
        up = jnp.concatenate([zero_row, src[:H - 1, :]], axis=0)   # row h-1
        dn = jnp.concatenate([src[1:, :], zero_row], axis=0)       # row h+1
        # Width taps + input channels are folded into the banded weights:
        # one lane-aligned matmul per kernel row.
        acc = jnp.dot(up, t_ref[0], preferred_element_type=jnp.float32)
        acc += jnp.dot(src, t_ref[1], preferred_element_type=jnp.float32)
        acc += jnp.dot(dn, t_ref[2], preferred_element_type=jnp.float32)
        return acc                                                  # (H, W*C)

    # ConvBlock 1: conv3x3 + folded BN + ReLU.
    h = conv3x3(x, t1_ref) * s1_ref[...] + b1_ref[...]
    h = jnp.maximum(h, 0.0)

    # ConvBlock 2: conv3x3 + folded BN (no activation).
    y = conv3x3(h, t2_ref) * s2_ref[...] + b2_ref[...]

    # Residual add (identity is the already-resident input) + final ReLU.
    o_ref[0] = jnp.maximum(y + x, 0.0).astype(o_ref.dtype)


def _band_weights(w_hwio, W):
    """(3, 3, Cin, Cout) HWIO -> (3, W*Cin, W*Cout) banded width-Toeplitz mats.

    t[kh, (w+kw-1)*Cin + ci, w*Cout + co] = w[kh, kw, ci, co]; out-of-range
    width taps (the pad=1 columns) are simply omitted (zero rows).
    """
    _, _, cin, cout = w_hwio.shape
    t = jnp.zeros((3, W * cin, W * cout), jnp.float32)
    for kw in range(3):
        for w in range(W):
            src = w + kw - 1
            if 0 <= src < W:
                t = t.at[:, src * cin:(src + 1) * cin,
                         w * cout:(w + 1) * cout].set(
                             w_hwio[:, kw].astype(jnp.float32))
    return t


def fold_bn(conv_bias, gamma, beta, running_mean, running_var, eps=1e-5):
    """Fold conv bias + eval-mode BatchNorm into per-channel (scale, bias)."""
    scale = gamma / jnp.sqrt(running_var + eps)
    bias = beta + scale * (conv_bias - running_mean)
    return scale.astype(jnp.float32), bias.astype(jnp.float32)


@jax.jit
def resblock_forward(x_nchw, params):
    """ResBlock forward. x_nchw: (N, C, H, W) float32. Returns (N, C, H, W)."""
    N, C, H, W = x_nchw.shape
    WC = W * C

    # NCHW -> NHWC, then present activations as a lane-dense (N, H, W*C) slab
    # (the reshape after the transpose is layout-free).
    x = jnp.transpose(x_nchw, (0, 2, 3, 1)).reshape(N, H, WC)

    s1, b1 = fold_bn(params["b1"], params["g1"], params["bt1"],
                     params["rm1"], params["rv1"])
    s2, b2 = fold_bn(params["b2"], params["g2"], params["bt2"],
                     params["rm2"], params["rv2"])

    # Prepacked, lane-aligned weights / affines (built once in the wrapper).
    t1 = _band_weights(params["w1"], W)
    t2 = _band_weights(params["w2"], W)
    s1t = jnp.tile(s1, W).reshape(1, WC)
    b1t = jnp.tile(b1, W).reshape(1, WC)
    s2t = jnp.tile(s2, W).reshape(1, WC)
    b2t = jnp.tile(b2, W).reshape(1, WC)

    kernel = functools.partial(_resblock_kernel, H=H, WC=WC)

    flops = N * 2 * 3 * 2 * H * WC * WC                  # 2 convs x 3 matmuls
    bytes_accessed = 4 * (2 * N * H * WC + 2 * 3 * WC * WC + 4 * WC)

    mat_map = lambda n: (0, 0, 0)
    vec_map = lambda n: (0, 0)

    out = pl.pallas_call(
        kernel,
        out_shape=jax.ShapeDtypeStruct((N, H, WC), x_nchw.dtype),
        grid_spec=pltpu.PrefetchScalarGridSpec(
            num_scalar_prefetch=0,
            grid=(N,),
            in_specs=[
                pl.BlockSpec((1, H, WC), lambda n: (n, 0, 0)),
                pl.BlockSpec((3, WC, WC), mat_map),
                pl.BlockSpec((1, WC), vec_map),
                pl.BlockSpec((1, WC), vec_map),
                pl.BlockSpec((3, WC, WC), mat_map),
                pl.BlockSpec((1, WC), vec_map),
                pl.BlockSpec((1, WC), vec_map),
            ],
            out_specs=pl.BlockSpec((1, H, WC), lambda n: (n, 0, 0)),
        ),
        compiler_params=pltpu.CompilerParams(
            dimension_semantics=("parallel",)),
        cost_estimate=pl.CostEstimate(
            flops=flops, transcendentals=0, bytes_accessed=bytes_accessed),
    )(x, t1, s1t, b1t, t2, s2t, b2t)

    return jnp.transpose(out.reshape(N, H, W, C), (0, 3, 1, 2))


# ---------------------------------------------------------------------------
# Pure-JAX reference (unfolded BN, lax conv) for correctness check
# ---------------------------------------------------------------------------
def resblock_reference(x_nchw, params, eps=1e-5):
    x = jnp.transpose(x_nchw, (0, 2, 3, 1))

    def conv(inp, w, b):
        return lax.conv_general_dilated(
            inp, w, window_strides=(1, 1), padding=((1, 1), (1, 1)),
            dimension_numbers=("NHWC", "HWIO", "NHWC")) + b

    def bn(z, g, bt, rm, rv):
        return (z - rm) * (g / jnp.sqrt(rv + eps)) + bt

    h = jnp.maximum(
        bn(conv(x, params["w1"], params["b1"]),
           params["g1"], params["bt1"], params["rm1"], params["rv1"]), 0.0)
    y = bn(conv(h, params["w2"], params["b2"]),
           params["g2"], params["bt2"], params["rm2"], params["rv2"])
    y = jnp.maximum(y + x, 0.0)
    return jnp.transpose(y, (0, 3, 1, 2))


if __name__ == "__main__":
    # Small shapes consistent with ResBlock(in_channels=out_channels, stride=1).
    # W * C = 128 -> the activation slab is exactly one lane-tile wide.
    N, C, H, W = 2, 8, 16, 16
    key = jax.random.PRNGKey(0)
    ks = jax.random.split(key, 12)

    x = jax.random.normal(ks[0], (N, C, H, W), jnp.float32)

    params = {
        # Conv weights in HWIO.
        "w1": 0.1 * jax.random.normal(ks[1], (3, 3, C, C), jnp.float32),
        "b1": 0.1 * jax.random.normal(ks[2], (C,), jnp.float32),
        "w2": 0.1 * jax.random.normal(ks[3], (3, 3, C, C), jnp.float32),
        "b2": 0.1 * jax.random.normal(ks[4], (C,), jnp.float32),
        # BatchNorm (inference mode) parameters / running stats.
        "g1": 1.0 + 0.1 * jax.random.normal(ks[5], (C,), jnp.float32),
        "bt1": 0.1 * jax.random.normal(ks[6], (C,), jnp.float32),
        "rm1": 0.1 * jax.random.normal(ks[7], (C,), jnp.float32),
        "rv1": 1.0 + 0.1 * jax.random.uniform(ks[8], (C,), jnp.float32),
        "g2": 1.0 + 0.1 * jax.random.normal(ks[9], (C,), jnp.float32),
        "bt2": 0.1 * jax.random.normal(ks[10], (C,), jnp.float32),
        "rm2": 0.1 * jax.random.normal(ks[11], (C,), jnp.float32),
        "rv2": jnp.ones((C,), jnp.float32),
    }

    out = jax.block_until_ready(resblock_forward(x, params))
    ref = jax.block_until_ready(resblock_reference(x, params))

    assert out.shape == (N, C, H, W), out.shape
    max_err = float(jnp.max(jnp.abs(out - ref)))
    assert max_err < 2e-4, max_err

    print("KERNEL_OK")
</pallas_src>

<mosaic_0001>
module attributes {stable_mosaic.version = 11 : i64} {
  func.func @_resblock_kernel(%arg0: i32, %arg1: memref<1x16x128xf32, #tpu.memory_space<vmem>>, %arg2: memref<3x128x128xf32, #tpu.memory_space<vmem>>, %arg3: memref<1x128xf32, #tpu.memory_space<vmem>>, %arg4: memref<1x128xf32, #tpu.memory_space<vmem>>, %arg5: memref<3x128x128xf32, #tpu.memory_space<vmem>>, %arg6: memref<1x128xf32, #tpu.memory_space<vmem>>, %arg7: memref<1x128xf32, #tpu.memory_space<vmem>>, %arg8: memref<1x16x128xf32, #tpu.memory_space<vmem>>) attributes {dimension_semantics = [#tpu.dimension_semantics<parallel>], iteration_bounds = array<i64: 2>, scalar_prefetch = 0 : i64, scratch_operands = 0 : i64, tpu.core_type = #tpu.core_type<tc>, window_params = [{transform_indices = @transform_0, window_bounds = array<i64: 1, 16, 128>}, {pipeline_mode = #tpu.pipeline_mode<synchronous>, transform_indices = @transform_1, window_bounds = array<i64: 3, 128, 128>}, {pipeline_mode = #tpu.pipeline_mode<synchronous>, transform_indices = @transform_2, window_bounds = array<i64: 1, 128>}, {pipeline_mode = #tpu.pipeline_mode<synchronous>, transform_indices = @transform_3, window_bounds = array<i64: 1, 128>}, {pipeline_mode = #tpu.pipeline_mode<synchronous>, transform_indices = @transform_4, window_bounds = array<i64: 3, 128, 128>}, {pipeline_mode = #tpu.pipeline_mode<synchronous>, transform_indices = @transform_5, window_bounds = array<i64: 1, 128>}, {pipeline_mode = #tpu.pipeline_mode<synchronous>, transform_indices = @transform_6, window_bounds = array<i64: 1, 128>}, {transform_indices = @transform_7, window_bounds = array<i64: 1, 16, 128>}]} {
    %c0 = arith.constant 0 : index
    %c0_0 = arith.constant 0 : index
    %c0_1 = arith.constant 0 : index
    %0 = vector.load %arg1[%c0, %c0_0, %c0_1] : memref<1x16x128xf32, #tpu.memory_space<vmem>>, vector<1x16x128xf32>
    %1 = vector.shape_cast %0 : vector<1x16x128xf32> to vector<16x128xf32>
    %cst = arith.constant 0.000000e+00 : f32
    %2 = vector.broadcast %cst : f32 to vector<1x128xf32>
    %3 = vector.extract_strided_slice %1 {offsets = [0, 0], sizes = [15, 128], strides = [1, 1]} : vector<16x128xf32> to vector<15x128xf32>
    %4 = tpu.concatenate %2, %3 in 0 : vector<1x128xf32>, vector<15x128xf32> -> vector<16x128xf32>
    %5 = vector.extract_strided_slice %1 {offsets = [1, 0], sizes = [15, 128], strides = [1, 1]} : vector<16x128xf32> to vector<15x128xf32>
    %6 = tpu.concatenate %5, %2 in 0 : vector<15x128xf32>, vector<1x128xf32> -> vector<16x128xf32>
    %c0_2 = arith.constant 0 : index
    %c0_3 = arith.constant 0 : index
    %c0_4 = arith.constant 0 : index
    %7 = vector.load %arg2[%c0_2, %c0_3, %c0_4] : memref<3x128x128xf32, #tpu.memory_space<vmem>>, vector<1x128x128xf32>
    %8 = vector.shape_cast %7 : vector<1x128x128xf32> to vector<128x128xf32>
    %cst_5 = arith.constant dense<0.000000e+00> : vector<16x128xf32>
    %9 = tpu.matmul %4, %8, %cst_5 {dimension_numbers = #tpu.dot_dimension_numbers<[1], [0], [0], [1], [0, 0, 1, 1], [], []>} : vector<16x128xf32>, vector<128x128xf32>, vector<16x128xf32> -> vector<16x128xf32>
    %c1 = arith.constant 1 : index
    %c0_6 = arith.constant 0 : index
    %c0_7 = arith.constant 0 : index
    %10 = vector.load %arg2[%c1, %c0_6, %c0_7] : memref<3x128x128xf32, #tpu.memory_space<vmem>>, vector<1x128x128xf32>
    %11 = vector.shape_cast %10 : vector<1x128x128xf32> to vector<128x128xf32>
    %cst_8 = arith.constant dense<0.000000e+00> : vector<16x128xf32>
    %12 = tpu.matmul %1, %11, %cst_8 {dimension_numbers = #tpu.dot_dimension_numbers<[1], [0], [0], [1], [0, 0, 1, 1], [], []>} : vector<16x128xf32>, vector<128x128xf32>, vector<16x128xf32> -> vector<16x128xf32>
    %13 = arith.addf %9, %12 : vector<16x128xf32>
    %c2 = arith.constant 2 : index
    %c0_9 = arith.constant 0 : index
    %c0_10 = arith.constant 0 : index
    %14 = vector.load %arg2[%c2, %c0_9, %c0_10] : memref<3x128x128xf32, #tpu.memory_space<vmem>>, vector<1x128x128xf32>
    %15 = vector.shape_cast %14 : vector<1x128x128xf32> to vector<128x128xf32>
    %cst_11 = arith.constant dense<0.000000e+00> : vector<16x128xf32>
    %16 = tpu.matmul %6, %15, %cst_11 {dimension_numbers = #tpu.dot_dimension_numbers<[1], [0], [0], [1], [0, 0, 1, 1], [], []>} : vector<16x128xf32>, vector<128x128xf32>, vector<16x128xf32> -> vector<16x128xf32>
    %17 = arith.addf %13, %16 : vector<16x128xf32>
    %c0_12 = arith.constant 0 : index
    %c0_13 = arith.constant 0 : index
    %18 = vector.load %arg3[%c0_12, %c0_13] : memref<1x128xf32, #tpu.memory_space<vmem>>, vector<1x128xf32>
    %19 = vector.broadcast %18 : vector<1x128xf32> to vector<16x128xf32>
    %20 = arith.mulf %17, %19 : vector<16x128xf32>
    %c0_14 = arith.constant 0 : index
    %c0_15 = arith.constant 0 : index
    %21 = vector.load %arg4[%c0_14, %c0_15] : memref<1x128xf32, #tpu.memory_space<vmem>>, vector<1x128xf32>
    %22 = vector.broadcast %21 : vector<1x128xf32> to vector<16x128xf32>
    %23 = arith.addf %20, %22 : vector<16x128xf32>
    %cst_16 = arith.constant 0.000000e+00 : f32
    %24 = vector.broadcast %cst_16 : f32 to vector<16x128xf32>
    %25 = arith.maximumf %23, %24 : vector<16x128xf32>
    %26 = vector.extract_strided_slice %25 {offsets = [0, 0], sizes = [15, 128], strides = [1, 1]} : vector<16x128xf32> to vector<15x128xf32>
    %27 = tpu.concatenate %2, %26 in 0 : vector<1x128xf32>, vector<15x128xf32> -> vector<16x128xf32>
    %28 = vector.extract_strided_slice %25 {offsets = [1, 0], sizes = [15, 128], strides = [1, 1]} : vector<16x128xf32> to vector<15x128xf32>
    %29 = tpu.concatenate %28, %2 in 0 : vector<15x128xf32>, vector<1x128xf32> -> vector<16x128xf32>
    %c0_17 = arith.constant 0 : index
    %c0_18 = arith.constant 0 : index
    %c0_19 = arith.constant 0 : index
    %30 = vector.load %arg5[%c0_17, %c0_18, %c0_19] : memref<3x128x128xf32, #tpu.memory_space<vmem>>, vector<1x128x128xf32>
    %31 = vector.shape_cast %30 : vector<1x128x128xf32> to vector<128x128xf32>
    %cst_20 = arith.constant dense<0.000000e+00> : vector<16x128xf32>
    %32 = tpu.matmul %27, %31, %cst_20 {dimension_numbers = #tpu.dot_dimension_numbers<[1], [0], [0], [1], [0, 0, 1, 1], [], []>} : vector<16x128xf32>, vector<128x128xf32>, vector<16x128xf32> -> vector<16x128xf32>
    %c1_21 = arith.constant 1 : index
    %c0_22 = arith.constant 0 : index
    %c0_23 = arith.constant 0 : index
    %33 = vector.load %arg5[%c1_21, %c0_22, %c0_23] : memref<3x128x128xf32, #tpu.memory_space<vmem>>, vector<1x128x128xf32>
    %34 = vector.shape_cast %33 : vector<1x128x128xf32> to vector<128x128xf32>
    %cst_24 = arith.constant dense<0.000000e+00> : vector<16x128xf32>
    %35 = tpu.matmul %25, %34, %cst_24 {dimension_numbers = #tpu.dot_dimension_numbers<[1], [0], [0], [1], [0, 0, 1, 1], [], []>} : vector<16x128xf32>, vector<128x128xf32>, vector<16x128xf32> -> vector<16x128xf32>
    %36 = arith.addf %32, %35 : vector<16x128xf32>
    %c2_25 = arith.constant 2 : index
    %c0_26 = arith.constant 0 : index
    %c0_27 = arith.constant 0 : index
    %37 = vector.load %arg5[%c2_25, %c0_26, %c0_27] : memref<3x128x128xf32, #tpu.memory_space<vmem>>, vector<1x128x128xf32>
    %38 = vector.shape_cast %37 : vector<1x128x128xf32> to vector<128x128xf32>
    %cst_28 = arith.constant dense<0.000000e+00> : vector<16x128xf32>
    %39 = tpu.matmul %29, %38, %cst_28 {dimension_numbers = #tpu.dot_dimension_numbers<[1], [0], [0], [1], [0, 0, 1, 1], [], []>} : vector<16x128xf32>, vector<128x128xf32>, vector<16x128xf32> -> vector<16x128xf32>
    %40 = arith.addf %36, %39 : vector<16x128xf32>
    %c0_29 = arith.constant 0 : index
    %c0_30 = arith.constant 0 : index
    %41 = vector.load %arg6[%c0_29, %c0_30] : memref<1x128xf32, #tpu.memory_space<vmem>>, vector<1x128xf32>
    %42 = vector.broadcast %41 : vector<1x128xf32> to vector<16x128xf32>
    %43 = arith.mulf %40, %42 : vector<16x128xf32>
    %c0_31 = arith.constant 0 : index
    %c0_32 = arith.constant 0 : index
    %44 = vector.load %arg7[%c0_31, %c0_32] : memref<1x128xf32, #tpu.memory_space<vmem>>, vector<1x128xf32>
    %45 = vector.broadcast %44 : vector<1x128xf32> to vector<16x128xf32>
    %46 = arith.addf %43, %45 : vector<16x128xf32>
    %47 = arith.addf %46, %1 : vector<16x128xf32>
    %cst_33 = arith.constant 0.000000e+00 : f32
    %48 = vector.broadcast %cst_33 : f32 to vector<16x128xf32>
    %49 = arith.maximumf %47, %48 : vector<16x128xf32>
    %c0_34 = arith.constant 0 : index
    %c0_35 = arith.constant 0 : index
    %c0_36 = arith.constant 0 : index
    %50 = vector.load %arg8[%c0_34, %c0_35, %c0_36] : memref<1x16x128xf32, #tpu.memory_space<vmem>>, vector<1x16x128xf32>
    %51 = vector.shape_cast %50 : vector<1x16x128xf32> to vector<16x128xf32>
    %52 = vector.shape_cast %49 : vector<16x128xf32> to vector<1x16x128xf32>
    tpu.vector_store %arg8[%c0_34, %c0_35, %c0_36], %52 {strides = array<i32>} : memref<1x16x128xf32, #tpu.memory_space<vmem>>, vector<1x16x128xf32>,
    return
  }
  func.func @transform_0(%arg0: i32) -> (i32, i32, i32) {
    %c0_i32 = arith.constant 0 : i32
    %c0_i32_0 = arith.constant 0 : i32
    %c0_i32_1 = arith.constant 0 : i32
    return %arg0, %c0_i32, %c0_i32_0 : i32, i32, i32
  }
  func.func @transform_1(%arg0: i32) -> (i32, i32, i32) {
    %c0_i32 = arith.constant 0 : i32
    %c0_i32_0 = arith.constant 0 : i32
    %c0_i32_1 = arith.constant 0 : i32
    %c0_i32_2 = arith.constant 0 : i32
    return %c0_i32, %c0_i32_0, %c0_i32_1 : i32, i32, i32
  }
  func.func @transform_2(%arg0: i32) -> (i32, i32) {
    %c0_i32 = arith.constant 0 : i32
    %c0_i32_0 = arith.constant 0 : i32
    %c0_i32_1 = arith.constant 0 : i32
    return %c0_i32, %c0_i32_0 : i32, i32
  }
  func.func @transform_3(%arg0: i32) -> (i32, i32) {
    %c0_i32 = arith.constant 0 : i32
    %c0_i32_0 = arith.constant 0 : i32
    %c0_i32_1 = arith.constant 0 : i32
    return %c0_i32, %c0_i32_0 : i32, i32
  }
  func.func @transform_4(%arg0: i32) -> (i32, i32, i32) {
    %c0_i32 = arith.constant 0 : i32
    %c0_i32_0 = arith.constant 0 : i32
    %c0_i32_1 = arith.constant 0 : i32
    %c0_i32_2 = arith.constant 0 : i32
    return %c0_i32, %c0_i32_0, %c0_i32_1 : i32, i32, i32
  }
  func.func @transform_5(%arg0: i32) -> (i32, i32) {
    %c0_i32 = arith.constant 0 : i32
    %c0_i32_0 = arith.constant 0 : i32
    %c0_i32_1 = arith.constant 0 : i32
    return %c0_i32, %c0_i32_0 : i32, i32
  }
  func.func @transform_6(%arg0: i32) -> (i32, i32) {
    %c0_i32 = arith.constant 0 : i32
    %c0_i32_0 = arith.constant 0 : i32
    %c0_i32_1 = arith.constant 0 : i32
    return %c0_i32, %c0_i32_0 : i32, i32
  }
  func.func @transform_7(%arg0: i32) -> (i32, i32, i32) {
    %c0_i32 = arith.constant 0 : i32
    %c0_i32_0 = arith.constant 0 : i32
    %c0_i32_1 = arith.constant 0 : i32
    return %arg0, %c0_i32, %c0_i32_0 : i32, i32, i32
  }
}

</mosaic_0001>

<llo_original>
// kernel: tile.23
$region0: #{tile.23}
  #allocation0 [shape = 's32[1]{0}', space=sflag, size = 0x4, scoped, tag = 'scoped memory for tile.23']
  %s0 = inlined_call_operand.vmem [shape: f32[8], index: 0, kind: input, shape index: {}]
  %s1 = inlined_call_operand.vmem [shape: f32[16,8], index: 1, kind: output, shape index: {}]
  // Predicated region
  $region2: #{tile.23} parent=0 // pred_check
    _
  $region3: #{tile.23} parent=0 // pred_check_branch
    %3 = sbr.rel (0) target = $region5
  $region4: #{tile.23} parent=0 // pred_region
    _
  $region5: #{tile.23} parent=0 // pred_fallthru
    _
  %v4 = vld [vmem:[%s0] ss:$0 sm:$0xff]
  %5 = vst [vmem:[%s1] sm:$0xff] %v4
  %s6 = scalar_lea.vmem %s1, 8
  %7 = vst [vmem:[%s6] sm:$0xff] %v4

// kernel: tile.24
$region0: #{tile.24}
  %s0 = inlined_call_operand.vmem [shape: f32[16,8], index: 0, kind: input, shape index: {}]
  %s1 = inlined_call_operand.vmem [shape: f32[1,128], index: 1, kind: output, shape index: {}]
  $region1: #{tile.24} parent=0
    #allocation0 [shape = 'u8[4096]{0}', space=vmem, size = 0x1000, scoped, tag = 'scoped mem for output reshape']
    %v2 = vld [vmem:[%s0] sm:$0x1]
    %vm3 = vcmask 64512
    %4 = vst.msk [vmem:[#allocation0] sm:$0x1] %vm3, %v2
    %s5 = scalar_lea.vmem %s0, 15
    %v6 = vld [vmem:[%s5] sm:$0x1]
    %7 = vrot.lane.b32.xlu0 %v6, 120
    %v8 = vpop.permute.xlu0 %7
    %vm9 = vcmask 1048512
    %10 = vst.msk [vmem:[#allocation0] sm:$0x1] %vm9, %v8
    %s11 = scalar_lea.vmem %s0, 14
    %v12 = vld [vmem:[%s11] sm:$0x1]
    %13 = vrot.lane.b32.xlu0 %v12, 112
    %v14 = vpop.permute.xlu0 %13
    %vm15 = vcmask 982912
    %16 = vst.msk [vmem:[#allocation0] sm:$0x1] %vm15, %v14
    %s17 = scalar_lea.vmem %s0, 13
    %v18 = vld [vmem:[%s17] sm:$0x1]
    %19 = vrot.lane.b32.xlu0 %v18, 104
    %v20 = vpop.permute.xlu0 %19
    %vm21 = vcmask 917312
    %22 = vst.msk [vmem:[#allocation0] sm:$0x1] %vm21, %v20
    %s23 = scalar_lea.vmem %s0, 12
    %v24 = vld [vmem:[%s23] sm:$0x1]
    %25 = vrot.lane.b32.xlu0 %v24, 96
    %v26 = vpop.permute.xlu0 %25
    %vm27 = vcmask 851712
    %28 = vst.msk [vmem:[#allocation0] sm:$0x1] %vm27, %v26
    %s29 = scalar_lea.vmem %s0, 11
    %v30 = vld [vmem:[%s29] sm:$0x1]
    %31 = vrot.lane.b32.xlu0 %v30, 88
    %v32 = vpop.permute.xlu0 %31
    %vm33 = vcmask 786112
    %34 = vst.msk [vmem:[#allocation0] sm:$0x1] %vm33, %v32
    %s35 = scalar_lea.vmem %s0, 10
    %v36 = vld [vmem:[%s35] sm:$0x1]
    %37 = vrot.lane.b32.xlu0 %v36, 80
    %v38 = vpop.permute.xlu0 %37
    %vm39 = vcmask 720512
    %40 = vst.msk [vmem:[#allocation0] sm:$0x1] %vm39, %v38
    %s41 = scalar_lea.vmem %s0, 9
    %v42 = vld [vmem:[%s41] sm:$0x1]
    %43 = vrot.lane.b32.xlu0 %v42, 72
    %v44 = vpop.permute.xlu0 %43
    %vm45 = vcmask 654912
    %46 = vst.msk [vmem:[#allocation0] sm:$0x1] %vm45, %v44
    %s47 = scalar_lea.vmem %s0, 8
    %v48 = vld [vmem:[%s47] sm:$0x1]
    %49 = vrot.lane.b32.xlu0 %v48, 64
    %v50 = vpop.permute.xlu0 %49
    %vm51 = vcmask 589312
    %52 = vst.msk [vmem:[#allocation0] sm:$0x1] %vm51, %v50
    %s53 = scalar_lea.vmem %s0, 7
    %v54 = vld [vmem:[%s53] sm:$0x1]
    %55 = vrot.lane.b32.xlu0 %v54, 56
    %v56 = vpop.permute.xlu0 %55
    %vm57 = vcmask 523712
    %58 = vst.msk [vmem:[#allocation0] sm:$0x1] %vm57, %v56
    %s59 = scalar_lea.vmem %s0, 6
    %v60 = vld [vmem:[%s59] sm:$0x1]
    %61 = vrot.lane.b32.xlu0 %v60, 48
    %v62 = vpop.permute.xlu0 %61
    %vm63 = vcmask 458112
    %64 = vst.msk [vmem:[#allocation0] sm:$0x1] %vm63, %v62
    %s65 = scalar_lea.vmem %s0, 5
    %v66 = vld [vmem:[%s65] sm:$0x1]
    %67 = vrot.lane.b32.xlu0 %v66, 40
    %v68 = vpop.permute.xlu0 %67
    %vm69 = vcmask 392512
    %70 = vst.msk [vmem:[#allocation0] sm:$0x1] %vm69, %v68
    %s71 = scalar_lea.vmem %s0, 4
    %v72 = vld [vmem:[%s71] sm:$0x1]
    %73 = vrot.lane.b32.xlu0 %v72, 32
    %v74 = vpop.permute.xlu0 %73
    %vm75 = vcmask 326912
    %76 = vst.msk [vmem:[#allocation0] sm:$0x1] %vm75, %v74
    %s77 = scalar_lea.vmem %s0, 3
    %v78 = vld [vmem:[%s77] sm:$0x1]
    %79 = vrot.lane.b32.xlu0 %v78, 24
    %v80 = vpop.permute.xlu0 %79
    %vm81 = vcmask 261312
    %82 = vst.msk [vmem:[#allocation0] sm:$0x1] %vm81, %v80
    %s83 = scalar_lea.vmem %s0, 2
    %v84 = vld [vmem:[%s83] sm:$0x1]
    %85 = vrot.lane.b32.xlu0 %v84, 16
    %v86 = vpop.permute.xlu0 %85
    %vm87 = vcmask 195712
    %88 = vst.msk [vmem:[#allocation0] sm:$0x1] %vm87, %v86
    %s89 = scalar_lea.vmem %s0, 1
    %v90 = vld [vmem:[%s89] sm:$0x1]
    %91 = vrot.lane.b32.xlu0 %v90, 8
    %v92 = vpop.permute.xlu0 %91
    %vm93 = vcmask 130112
    %94 = vst.msk [vmem:[#allocation0] sm:$0x1] %vm93, %v92
    %s96 = sshllo.u32 0, 1
    %v98 = vld [vmem:[#allocation0] sm:%s96]
    %s99 = sshllo.u32 0, 1
    %100 = vst [vmem:[%s1] sm:%s99] %v98

// kernel: resblock_forward.1
$region0: #{resblock_forward.1}
  #allocation0 [shape = 'u32[]', space=smem, size = 0x4, offset = 0x4, fixed_abs, tag = 'smem constant byte address 0x4 - core index']
  #allocation1 [shape = 'u32[144,128]{1,0:T(1,128)}', space=vmem, size = 0x12000, scoped, tag = 'internal scratch']
  %s0 = inlined_call_operand.vmem [shape: f32[2,16,128], index: 0, kind: input, shape index: {}]
  %s1 = inlined_call_operand.vmem [shape: f32[3,128,128], index: 1, kind: input, shape index: {}]
  %s2 = inlined_call_operand.vmem [shape: f32[1,128], index: 2, kind: input, shape index: {}]
  %s3 = inlined_call_operand.vmem [shape: f32[1,128], index: 3, kind: input, shape index: {}]
  %s4 = inlined_call_operand.vmem [shape: f32[3,128,128], index: 4, kind: input, shape index: {}]
  %s5 = inlined_call_operand.vmem [shape: f32[1,128], index: 5, kind: input, shape index: {}]
  %s6 = inlined_call_operand.vmem [shape: f32[1,128], index: 6, kind: input, shape index: {}]
  %s7 = inlined_call_operand.vmem [shape: f32[2,16,128], index: 7, kind: output, shape index: {}]
  %s8 = sld [smem:[#allocation0]]
  $region61: #{resblock_forward.1} parent=0
    _
  %s10 = ssub.s32 1, %s8
  %s11 = scalar_select 0, %s10, %s8
  loop: start=0, step=1, limit=4
  $region2: #{resblock_forward.1} parent=0 // loop_pre_header
    _
  $region3: #{resblock_forward.1} parent=0 // loop_header
    %s13 = sphi 0, %s17
    %p14 = scmp.ge.s32.totalorder %s13, 4
    %s23 = sphi 0, %s25
    %s26 = sphi 0, %s23
    %s27 = sphi 0, %s26
    %s43 = sphi 0, %s27
    %s47 = sphi 0, %s47
    %s49 = sphi 0, %s47
    %s50 = sphi 0, %s49
    %s64 = sphi 0, %s50
    %s68 = sphi 0, %s68
    %s70 = sphi 0, %s68
    %s71 = sphi 0, %s70
    %s85 = sphi 0, %s71
    %s89 = sphi 0, %s89
    %s91 = sphi 0, %s89
    %s92 = sphi 0, %s91
    %s106 = sphi 0, %s92
    %s110 = sphi 0, %s110
    %s112 = sphi 0, %s110
    %s113 = sphi 0, %s112
    %s127 = sphi 0, %s113
    %s131 = sphi 0, %s131
    %s133 = sphi 0, %s131
    %s134 = sphi 0, %s133
    %s148 = sphi 0, %s134
    %s152 = sphi 0, %s152
    %s154 = sphi 0, %s152
    %s155 = sphi 0, %s154
    %s169 = sphi 0, %s155
    %s175 = sphi 0, %s177
    %s178 = sphi 0, %s175
    %s179 = sphi 0, %s178
    %s195 = sphi 0, %s179
  $region4: #{resblock_forward.1} parent=0 // loop_header_branch
    %16 = sbr.rel (%p14) target = $region8
  $region5: #{resblock_forward.1} parent=0 // loop_body
    %s18 = ssub.s32 %s13, 1
    %s19 = ssub.s32 %s13, 2
    %s20 = sadd.s32 %s13, 1
    %s21 = ssub.s32 %s13, %s20
    %p22 = scmp.eq.s32.totalorder %s21, 0
    %s24 = sadd.s32 %s23, 1
    %s25 = scalar_select %p22, %s23, %s24
    %p28 = pneg %p22
    %p29 = scmp.eq.s32.totalorder %s13, 1
    %p30 = por %p28, %p29
    %p31 = scmp.ne.s32.totalorder %s23, %s26
    %p32 = scmp.eq.s32.totalorder %s13, 0
    %p33 = por %p31, %p32
    %p34 = scmp.ne.s32.totalorder %s23, %s26
    %p35 = scmp.eq.s32.totalorder %s18, 1
    %p36 = por %p34, %p35
    %p37 = scmp.ne.s32.totalorder %s26, %s27
    %p38 = scmp.eq.s32.totalorder %s18, 0
    %p39 = por %p37, %p38
    %p40 = scmp.ne.s32.totalorder %s26, %s27
    %p41 = scmp.eq.s32.totalorder %s19, 1
    %p42 = por %p40, %p41
    %p44 = scmp.ne.s32.totalorder %s27, %s43
    %p45 = scmp.eq.s32.totalorder %s19, 0
    %p46 = por %p44, %p45
    %s48 = sadd.s32 %s47, 1
    %p51 = scmp.eq.s32.totalorder %s13, 1
    %p52 = scmp.ne.s32.totalorder %s47, %s49
    %p53 = scmp.eq.s32.totalorder %s13, 0
    %p54 = por %p52, %p53
    %p55 = scmp.ne.s32.totalorder %s47, %s49
    %p56 = scmp.eq.s32.totalorder %s18, 1
    %p57 = por %p55, %p56
    %p58 = scmp.ne.s32.totalorder %s49, %s50
    %p59 = scmp.eq.s32.totalorder %s18, 0
    %p60 = por %p58, %p59
    %p61 = scmp.ne.s32.totalorder %s49, %s50
    %p62 = scmp.eq.s32.totalorder %s19, 1
    %p63 = por %p61, %p62
    %p65 = scmp.ne.s32.totalorder %s50, %s64
    %p66 = scmp.eq.s32.totalorder %s19, 0
    %p67 = por %p65, %p66
    %s69 = sadd.s32 %s68, 1
    %p72 = scmp.eq.s32.totalorder %s13, 1
    %p73 = scmp.ne.s32.totalorder %s68, %s70
    %p74 = scmp.eq.s32.totalorder %s13, 0
    %p75 = por %p73, %p74
    %p76 = scmp.ne.s32.totalorder %s68, %s70
    %p77 = scmp.eq.s32.totalorder %s18, 1
    %p78 = por %p76, %p77
    %p79 = scmp.ne.s32.totalorder %s70, %s71
    %p80 = scmp.eq.s32.totalorder %s18, 0
    %p81 = por %p79, %p80
    %p82 = scmp.ne.s32.totalorder %s70, %s71
    %p83 = scmp.eq.s32.totalorder %s19, 1
    %p84 = por %p82, %p83
    %p86 = scmp.ne.s32.totalorder %s71, %s85
    %p87 = scmp.eq.s32.totalorder %s19, 0
    %p88 = por %p86, %p87
    %s90 = sadd.s32 %s89, 1
    %p93 = scmp.eq.s32.totalorder %s13, 1
    %p94 = scmp.ne.s32.totalorder %s89, %s91
    %p95 = scmp.eq.s32.totalorder %s13, 0
    %p96 = por %p94, %p95
    %p97 = scmp.ne.s32.totalorder %s89, %s91
    %p98 = scmp.eq.s32.totalorder %s18, 1
    %p99 = por %p97, %p98
    %p100 = scmp.ne.s32.totalorder %s91, %s92
    %p101 = scmp.eq.s32.totalorder %s18, 0
    %p102 = por %p100, %p101
    %p103 = scmp.ne.s32.totalorder %s91, %s92
    %p104 = scmp.eq.s32.totalorder %s19, 1
    %p105 = por %p103, %p104
    %p107 = scmp.ne.s32.totalorder %s92, %s106
    %p108 = scmp.eq.s32.totalorder %s19, 0
    %p109 = por %p107, %p108
    %s111 = sadd.s32 %s110, 1
    %p114 = scmp.eq.s32.totalorder %s13, 1
    %p115 = scmp.ne.s32.totalorder %s110, %s112
    %p116 = scmp.eq.s32.totalorder %s13, 0
    %p117 = por %p115, %p116
    %p118 = scmp.ne.s32.totalorder %s110, %s112
    %p119 = scmp.eq.s32.totalorder %s18, 1
    %p120 = por %p118, %p119
    %p121 = scmp.ne.s32.totalorder %s112, %s113
    %p122 = scmp.eq.s32.totalorder %s18, 0
    %p123 = por %p121, %p122
    %p124 = scmp.ne.s32.totalorder %s112, %s113
    %p125 = scmp.eq.s32.totalorder %s19, 1
    %p126 = por %p124, %p125
    %p128 = scmp.ne.s32.totalorder %s113, %s127
    %p129 = scmp.eq.s32.totalorder %s19, 0
    %p130 = por %p128, %p129
    %s132 = sadd.s32 %s131, 1
    %p135 = scmp.eq.s32.totalorder %s13, 1
    %p136 = scmp.ne.s32.totalorder %s131, %s133
    %p137 = scmp.eq.s32.totalorder %s13, 0
    %p138 = por %p136, %p137
    %p139 = scmp.ne.s32.totalorder %s131, %s133
    %p140 = scmp.eq.s32.totalorder %s18, 1
    %p141 = por %p139, %p140
    %p142 = scmp.ne.s32.totalorder %s133, %s134
    %p143 = scmp.eq.s32.totalorder %s18, 0
    %p144 = por %p142, %p143
    %p145 = scmp.ne.s32.totalorder %s133, %s134
    %p146 = scmp.eq.s32.totalorder %s19, 1
    %p147 = por %p145, %p146
    %p149 = scmp.ne.s32.totalorder %s134, %s148
    %p150 = scmp.eq.s32.totalorder %s19, 0
    %p151 = por %p149, %p150
    %s153 = sadd.s32 %s152, 1
    %p156 = scmp.eq.s32.totalorder %s13, 1
    %p157 = scmp.ne.s32.totalorder %s152, %s154
    %p158 = scmp.eq.s32.totalorder %s13, 0
    %p159 = por %p157, %p158
    %p160 = scmp.ne.s32.totalorder %s152, %s154
    %p161 = scmp.eq.s32.totalorder %s18, 1
    %p162 = por %p160, %p161
    %p163 = scmp.ne.s32.totalorder %s154, %s155
    %p164 = scmp.eq.s32.totalorder %s18, 0
    %p165 = por %p163, %p164
    %p166 = scmp.ne.s32.totalorder %s154, %s155
    %p167 = scmp.eq.s32.totalorder %s19, 1
    %p168 = por %p166, %p167
    %p170 = scmp.ne.s32.totalorder %s155, %s169
    %p171 = scmp.eq.s32.totalorder %s19, 0
    %p172 = por %p170, %p171
    %s173 = ssub.s32 %s13, %s20
    %p174 = scmp.eq.s32.totalorder %s173, 0
    %s176 = sadd.s32 %s175, 1
    %s177 = scalar_select %p174, %s175, %s176
    %p180 = pneg %p174
    %p181 = scmp.eq.s32.totalorder %s13, 1
    %p182 = por %p180, %p181
    %p183 = scmp.ne.s32.totalorder %s175, %s178
    %p184 = scmp.eq.s32.totalorder %s13, 0
    %p185 = por %p183, %p184
    %p186 = scmp.ne.s32.totalorder %s175, %s178
    %p187 = scmp.eq.s32.totalorder %s18, 1
    %p188 = por %p186, %p187
    %p189 = scmp.ne.s32.totalorder %s178, %s179
    %p190 = scmp.eq.s32.totalorder %s18, 0
    %p191 = por %p189, %p190
    %p192 = scmp.ne.s32.totalorder %s178, %s179
    %p193 = scmp.eq.s32.totalorder %s19, 1
    %p194 = por %p192, %p193
    %p196 = scmp.ne.s32.totalorder %s179, %s195
    %p197 = scmp.eq.s32.totalorder %s19, 0
    %p198 = por %p196, %p197
    %p199 = scmp.le.s32.totalorder 1, %s13
    %p200 = scmp.lt.s32.totalorder %s13, 3
    %p201 = pnand %p199, %p200
    %p202 = pneg %p201
    // Predicated region
    $region9: #{resblock_forward.1} parent=5 // pred_check
      _
    $region10: #{resblock_forward.1} parent=5 // pred_check_branch
      %204 = sbr.rel (%p201) target = $region12
    $region11: #{resblock_forward.1} parent=5 // pred_region
      %s205 = ssub.s32 %s13, 1
      // Predicated region
      $region13: #{resblock_forward.1} parent=11 // pred_check
        %p206 = pneg %p60
      $region14: #{resblock_forward.1} parent=11 // pred_check_branch
        %208 = sbr.rel (%p206) target = $region16
      $region15: #{resblock_forward.1} parent=11 // pred_region
        _
      $region16: #{resblock_forward.1} parent=11 // pred_fallthru
        _
      // Predicated region
      $region17: #{resblock_forward.1} parent=11 // pred_check
        %p209 = pneg %p81
      $region18: #{resblock_forward.1} parent=11 // pred_check_branch
        %211 = sbr.rel (%p209) target = $region20
      $region19: #{resblock_forward.1} parent=11 // pred_region
        _
      $region20: #{resblock_forward.1} parent=11 // pred_fallthru
        _
      // Predicated region
      $region21: #{resblock_forward.1} parent=11 // pred_check
        %p212 = pneg %p102
      $region22: #{resblock_forward.1} parent=11 // pred_check_branch
        %214 = sbr.rel (%p212) target = $region24
      $region23: #{resblock_forward.1} parent=11 // pred_region
        _
      $region24: #{resblock_forward.1} parent=11 // pred_fallthru
        _
      // Predicated region
      $region25: #{resblock_forward.1} parent=11 // pred_check
        %p215 = pneg %p123
      $region26: #{resblock_forward.1} parent=11 // pred_check_branch
        %217 = sbr.rel (%p215) target = $region28
      $region27: #{resblock_forward.1} parent=11 // pred_region
        _
      $region28: #{resblock_forward.1} parent=11 // pred_fallthru
        _
      // Predicated region
      $region29: #{resblock_forward.1} parent=11 // pred_check
        %p218 = pneg %p144
      $region30: #{resblock_forward.1} parent=11 // pred_check_branch
        %220 = sbr.rel (%p218) target = $region32
      $region31: #{resblock_forward.1} parent=11 // pred_region
        _
      $region32: #{resblock_forward.1} parent=11 // pred_fallthru
        _
      // Predicated region
      $region33: #{resblock_forward.1} parent=11 // pred_check
        %p221 = pneg %p165
      $region34: #{resblock_forward.1} parent=11 // pred_check_branch
        %223 = sbr.rel (%p221) target = $region36
      $region35: #{resblock_forward.1} parent=11 // pred_region
        _
      $region36: #{resblock_forward.1} parent=11 // pred_fallthru
        _
    $region12: #{resblock_forward.1} parent=5 // pred_fallthru
      _
    %p224 = scmp.lt.s32.totalorder %s13, 2
    // Predicated region
    $region37: #{resblock_forward.1} parent=5 // pred_check
      %p225 = pneg %p224
    $region38: #{resblock_forward.1} parent=5 // pred_check_branch
      %227 = sbr.rel (%p225) target = $region40
    $region39: #{resblock_forward.1} parent=5 // pred_region
      // Predicated region
      $region41: #{resblock_forward.1} parent=39 // pred_check
        %p228 = pneg %p33
      $region42: #{resblock_forward.1} parent=39 // pred_check_branch
        %230 = sbr.rel (%p228) target = $region44
      $region43: #{resblock_forward.1} parent=39 // pred_region
        %p231 = scmp.lt.s32.totalorder %s13, 1
        %s232 = scalar_select %p231, %s13, 1
        %s233 = smul.addr %s232, 2
        %s234 = smul.addr %s233, 8
        %s235 = scalar_lea.vmem %s0, %s234
      $region44: #{resblock_forward.1} parent=39 // pred_fallthru
        _
    $region40: #{resblock_forward.1} parent=5 // pred_fallthru
      _
    %p236 = scmp.le.s32.totalorder 1, %s13
    %p237 = scmp.lt.s32.totalorder %s13, 3
    %p238 = pnand %p236, %p237
    %p239 = pneg %p238
    // Predicated region
    $region45: #{resblock_forward.1} parent=5 // pred_check
      _
    $region46: #{resblock_forward.1} parent=5 // pred_check_branch
      %241 = sbr.rel (%p238) target = $region48
    $region47: #{resblock_forward.1} parent=5 // pred_region
      %s242 = ssub.s32 %s13, 1
      %p243 = scmp.lt.s32.totalorder %s18, 1
      %s244 = scalar_select %p243, %s18, 1
      %s245 = smul.addr %s244, 2
      %s246 = smul.addr %s245, 8
      %s247 = scalar_lea.vmem %s0, %s246
      %p248 = pneg %p39
      %p249 = pneg %p36
      %p250 = pneg %p60
      %p251 = pneg %p57
      %p252 = pneg %p81
      %p253 = pneg %p78
      %p254 = pneg %p102
      %p255 = pneg %p99
      %p256 = pneg %p123
      %p257 = pneg %p120
      %p258 = pneg %p144
      %p259 = pneg %p141
      %p260 = pneg %p165
      %p261 = pneg %p162
      %p262 = pneg %p191
      %p263 = pneg %p188
      %p264 = scmp.lt.s32.totalorder %s18, 1
      %s265 = scalar_select %p264, %s18, 1
      %s266 = smul.addr %s265, 2
      %s267 = smul.addr %s266, 8
      %s268 = scalar_lea.vmem %s7, %s267
      %p269 = scmp.lt.s32.totalorder %s18, 1
      %s270 = scalar_select %p269, %s18, 1
      %s271 = smul.addr %s270, 2
      %s272 = smul.addr %s271, 8
      %s273 = scalar_lea.vmem %s0, %s272
      %p274 = scmp.lt.s32.totalorder %s18, 1
      %s275 = scalar_select %p274, %s18, 1
      %s276 = smul.addr %s275, 2
      %s277 = smul.addr %s276, 8
      %s278 = scalar_lea.vmem %s7, %s277
      %v279 = vld [vmem:[%s273] sm:$0xff]
      %v280 = vld [vmem:[%s273 + $0x8] sm:$0xff]
      %vm283 = vcmask 1040384
      %v284 = vrot.slane %v279, 7
      %v285 = vrot.slane %v280, 7
      %v286 = vsel %vm283, %v284, %v285
      %v289 = vsel %vm283, 0.0, %v284
      %vm290 = vcmask 1046528
      %v291 = vrot.slane %v279, 1
      %v292 = vrot.slane %v280, 1
      %v293 = vsel %vm290, %v291, %v292
      %v296 = vsel %vm290, %v292, 0.0
      %v297 = vld [vmem:[%s1] sm:$0xff]
      %v298 = vld [vmem:[%s1 + $0x8] sm:$0xff]
      %v299 = vld [vmem:[%s1 + $0x10] sm:$0xff]
      %v300 = vld [vmem:[%s1 + $0x18] sm:$0xff]
      %v301 = vld [vmem:[%s1 + $0x20] sm:$0xff]
      %v302 = vld [vmem:[%s1 + $0x28] sm:$0xff]
      %v303 = vld [vmem:[%s1 + $0x30] sm:$0xff]
      %v304 = vld [vmem:[%s1 + $0x38] sm:$0xff]
      %v305 = vld [vmem:[%s1 + $0x40] sm:$0xff]
      %v306 = vld [vmem:[%s1 + $0x48] sm:$0xff]
      %v307 = vld [vmem:[%s1 + $0x50] sm:$0xff]
      %v308 = vld [vmem:[%s1 + $0x58] sm:$0xff]
      %v309 = vld [vmem:[%s1 + $0x60] sm:$0xff]
      %v310 = vld [vmem:[%s1 + $0x68] sm:$0xff]
      %v311 = vld [vmem:[%s1 + $0x70] sm:$0xff]
      %v312 = vld [vmem:[%s1 + $0x78] sm:$0xff]
      %s313 = scalar_lea.vmem %s1, 128
      %v314 = vld [vmem:[%s313] sm:$0xff]
      %v315 = vld [vmem:[%s313 + $0x8] sm:$0xff]
      %v316 = vld [vmem:[%s313 + $0x10] sm:$0xff]
      %v317 = vld [vmem:[%s313 + $0x18] sm:$0xff]
      %v318 = vld [vmem:[%s313 + $0x20] sm:$0xff]
      %v319 = vld [vmem:[%s313 + $0x28] sm:$0xff]
      %v320 = vld [vmem:[%s313 + $0x30] sm:$0xff]
      %v321 = vld [vmem:[%s313 + $0x38] sm:$0xff]
      %v322 = vld [vmem:[%s313 + $0x40] sm:$0xff]
      %v323 = vld [vmem:[%s313 + $0x48] sm:$0xff]
      %v324 = vld [vmem:[%s313 + $0x50] sm:$0xff]
      %v325 = vld [vmem:[%s313 + $0x58] sm:$0xff]
      %v326 = vld [vmem:[%s313 + $0x60] sm:$0xff]
      %v327 = vld [vmem:[%s313 + $0x68] sm:$0xff]
      %v328 = vld [vmem:[%s313 + $0x70] sm:$0xff]
      %v329 = vld [vmem:[%s313 + $0x78] sm:$0xff]
      %330 = vmatprep.subr.mxu0 0.0
      %331 = vmatpush1.msra.mxu0 %v314
      %332 = vmatprep.subr.mxu0 0.0
      %333 = vmatpush1.msra.mxu0 %v315
      %334 = vmatprep.subr.mxu0 0.0
      %335 = vmatpush1.msra.mxu0 %v316
      %336 = vmatprep.subr.mxu0 0.0
      %337 = vmatpush1.msra.mxu0 %v317
      %338 = vmatprep.subr.mxu0 0.0
      %339 = vmatpush1.msra.mxu0 %v318
      %340 = vmatprep.subr.mxu0 0.0
      %341 = vmatpush1.msra.mxu0 %v319
      %342 = vmatprep.subr.mxu0 0.0
      %343 = vmatpush1.msra.mxu0 %v320
      %344 = vmatprep.subr.mxu0 0.0
      %345 = vmatpush1.msra.mxu0 %v321
      %346 = vmatprep.subr.mxu0 0.0
      %347 = vmatpush1.msra.mxu0 %v322
      %348 = vmatprep.subr.mxu0 0.0
      %349 = vmatpush1.msra.mxu0 %v323
      %350 = vmatprep.subr.mxu0 0.0
      %351 = vmatpush1.msra.mxu0 %v324
      %352 = vmatprep.subr.mxu0 0.0
      %353 = vmatpush1.msra.mxu0 %v325
      %354 = vmatprep.subr.mxu0 0.0
      %355 = vmatpush1.msra.mxu0 %v326
      %356 = vmatprep.subr.mxu0 0.0
      %357 = vmatpush1.msra.mxu0 %v327
      %358 = vmatprep.subr.mxu0 0.0
      %359 = vmatpush1.msra.mxu0 %v328
      %360 = vmatprep.subr.mxu0 0.0
      %361 = vmatpush1.msra.mxu0 %v329
      %362 = vmatprep.subr.mxu0 0.0
      %363 = vmatpush1.msra.mxu0 0.0
      %364 = vmatprep.subr.mxu0 0.0
      %365 = vmatpush1.msra.mxu0 0.0
      %366 = vmatprep.subr.mxu0 0.0
      %367 = vmatpush1.msra.mxu0 0.0
      %368 = vmatprep.subr.mxu0 0.0
      %369 = vmatpush1.msra.mxu0 0.0
      %370 = vmatprep.subr.mxu0 0.0
      %371 = vmatpush1.msra.mxu0 0.0
      %372 = vmatprep.subr.mxu0 0.0
      %373 = vmatpush1.msra.mxu0 0.0
      %374 = vmatprep.subr.mxu0 0.0
      %375 = vmatpush1.msra.mxu0 0.0
      %376 = vmatprep.subr.mxu0 0.0
      %377 = vmatpush1.msra.mxu0 0.0
      %378 = vmatprep.subr.mxu0 0.0
      %379 = vmatpush1.msra.mxu0 0.0
      %380 = vmatprep.subr.mxu0 0.0
      %381 = vmatpush1.msra.mxu0 0.0
      %382 = vmatprep.subr.mxu0 0.0
      %383 = vmatpush1.msra.mxu0 0.0
      %384 = vmatprep.subr.mxu0 0.0
      %385 = vmatpush1.msra.mxu0 0.0
      %386 = vmatprep.subr.mxu0 0.0
      %387 = vmatpush1.msra.mxu0 0.0
      %388 = vmatprep.subr.mxu0 0.0
      %389 = vmatpush1.msra.mxu0 0.0
      %390 = vmatprep.subr.mxu0 0.0
      %391 = vmatpush1.msra.mxu0 0.0
      %392 = vmatprep.subr.mxu0 0.0
      %393 = vmatpush1.msra.mxu0 0.0
      %394 = vmatprep.mubr.f32.mxu0 0.0
      %395 = vmatmul.mubr.f32.gmra.mrb[0].mxu0 %v279
      %v396 = vpop.f32.mrb[0].mxu0
      %v397 = vadd.f32 0.0, %v396
      %v398 = vpop.f32.mrb[0].mxu0
      %399 = vmatprep.mubr.f32.mxu0 0.0
      %400 = vmatmul.mubr.f32.gmra.mrb[0].mxu0 %v280
      %v401 = vpop.f32.mrb[0].mxu0
      %v402 = vadd.f32 0.0, %v401
      %v403 = vpop.f32.mrb[0].mxu0
      %404 = vdwg.mxu0
      %405 = vmatprep.subr.mxu0 0.0
      %406 = vmatpush1.msra.mxu0 %v297
      %407 = vmatprep.subr.mxu0 0.0
      %408 = vmatpush1.msra.mxu0 %v298
      %409 = vmatprep.subr.mxu0 0.0
      %410 = vmatpush1.msra.mxu0 %v299
      %411 = vmatprep.subr.mxu0 0.0
      %412 = vmatpush1.msra.mxu0 %v300
      %413 = vmatprep.subr.mxu0 0.0
      %414 = vmatpush1.msra.mxu0 %v301
      %415 = vmatprep.subr.mxu0 0.0
      %416 = vmatpush1.msra.mxu0 %v302
      %417 = vmatprep.subr.mxu0 0.0
      %418 = vmatpush1.msra.mxu0 %v303
      %419 = vmatprep.subr.mxu0 0.0
      %420 = vmatpush1.msra.mxu0 %v304
      %421 = vmatprep.subr.mxu0 0.0
      %422 = vmatpush1.msra.mxu0 %v305
      %423 = vmatprep.subr.mxu0 0.0
      %424 = vmatpush1.msra.mxu0 %v306
      %425 = vmatprep.subr.mxu0 0.0
      %426 = vmatpush1.msra.mxu0 %v307
      %427 = vmatprep.subr.mxu0 0.0
      %428 = vmatpush1.msra.mxu0 %v308
      %429 = vmatprep.subr.mxu0 0.0
      %430 = vmatpush1.msra.mxu0 %v309
      %431 = vmatprep.subr.mxu0 0.0
      %432 = vmatpush1.msra.mxu0 %v310
      %433 = vmatprep.subr.mxu0 0.0
      %434 = vmatpush1.msra.mxu0 %v311
      %435 = vmatprep.subr.mxu0 0.0
      %436 = vmatpush1.msra.mxu0 %v312
      %437 = vmatprep.subr.mxu0 0.0
      %438 = vmatpush1.msra.mxu0 0.0
      %439 = vmatprep.subr.mxu0 0.0
      %440 = vmatpush1.msra.mxu0 0.0
      %441 = vmatprep.subr.mxu0 0.0
      %442 = vmatpush1.msra.mxu0 0.0
      %443 = vmatprep.subr.mxu0 0.0
      %444 = vmatpush1.msra.mxu0 0.0
      %445 = vmatprep.subr.mxu0 0.0
      %446 = vmatpush1.msra.mxu0 0.0
      %447 = vmatprep.subr.mxu0 0.0
      %448 = vmatpush1.msra.mxu0 0.0
      %449 = vmatprep.subr.mxu0 0.0
      %450 = vmatpush1.msra.mxu0 0.0
      %451 = vmatprep.subr.mxu0 0.0
      %452 = vmatpush1.msra.mxu0 0.0
      %453 = vmatprep.subr.mxu0 0.0
      %454 = vmatpush1.msra.mxu0 0.0
      %455 = vmatprep.subr.mxu0 0.0
      %456 = vmatpush1.msra.mxu0 0.0
      %457 = vmatprep.subr.mxu0 0.0
      %458 = vmatpush1.msra.mxu0 0.0
      %459 = vmatprep.subr.mxu0 0.0
      %460 = vmatpush1.msra.mxu0 0.0
      %461 = vmatprep.subr.mxu0 0.0
      %462 = vmatpush1.msra.mxu0 0.0
      %463 = vmatprep.subr.mxu0 0.0
      %464 = vmatpush1.msra.mxu0 0.0
      %465 = vmatprep.subr.mxu0 0.0
      %466 = vmatpush1.msra.mxu0 0.0
      %467 = vmatprep.subr.mxu0 0.0
      %468 = vmatpush1.msra.mxu0 0.0
      %469 = vmatprep.mubr.f32.mxu0 0.0
      %470 = vmatmul.mubr.f32.gmra.mrb[0].mxu0 %v289
      %v471 = vpop.f32.mrb[0].mxu0
      %v472 = vadd.f32 %v397, %v471
      %v473 = vpop.f32.mrb[0].mxu0
      %474 = vmatprep.mubr.f32.mxu0 0.0
      %475 = vmatmul.mubr.f32.gmra.mrb[0].mxu0 %v286
      %v476 = vpop.f32.mrb[0].mxu0
      %v477 = vadd.f32 %v402, %v476
      %v478 = vpop.f32.mrb[0].mxu0
      %479 = vdwg.mxu0
      %s480 = scalar_lea.vmem %s1, 256
      %v481 = vld [vmem:[%s480] sm:$0xff]
      %v482 = vld [vmem:[%s480 + $0x8] sm:$0xff]
      %v483 = vld [vmem:[%s480 + $0x10] sm:$0xff]
      %v484 = vld [vmem:[%s480 + $0x18] sm:$0xff]
      %v485 = vld [vmem:[%s480 + $0x20] sm:$0xff]
      %v486 = vld [vmem:[%s480 + $0x28] sm:$0xff]
      %v487 = vld [vmem:[%s480 + $0x30] sm:$0xff]
      %v488 = vld [vmem:[%s480 + $0x38] sm:$0xff]
      %v489 = vld [vmem:[%s480 + $0x40] sm:$0xff]
      %v490 = vld [vmem:[%s480 + $0x48] sm:$0xff]
      %v491 = vld [vmem:[%s480 + $0x50] sm:$0xff]
      %v492 = vld [vmem:[%s480 + $0x58] sm:$0xff]
      %v493 = vld [vmem:[%s480 + $0x60] sm:$0xff]
      %v494 = vld [vmem:[%s480 + $0x68] sm:$0xff]
      %v495 = vld [vmem:[%s480 + $0x70] sm:$0xff]
      %v496 = vld [vmem:[%s480 + $0x78] sm:$0xff]
      %497 = vmatprep.subr.mxu0 0.0
      %498 = vmatpush1.msra.mxu0 %v481
      %499 = vmatprep.subr.mxu0 0.0
      %500 = vmatpush1.msra.mxu0 %v482
      %501 = vmatprep.subr.mxu0 0.0
      %502 = vmatpush1.msra.mxu0 %v483
      %503 = vmatprep.subr.mxu0 0.0
      %504 = vmatpush1.msra.mxu0 %v484
      %505 = vmatprep.subr.mxu0 0.0
      %506 = vmatpush1.msra.mxu0 %v485
      %507 = vmatprep.subr.mxu0 0.0
      %508 = vmatpush1.msra.mxu0 %v486
      %509 = vmatprep.subr.mxu0 0.0
      %510 = vmatpush1.msra.mxu0 %v487
      %511 = vmatprep.subr.mxu0 0.0
      %512 = vmatpush1.msra.mxu0 %v488
      %513 = vmatprep.subr.mxu0 0.0
      %514 = vmatpush1.msra.mxu0 %v489
      %515 = vmatprep.subr.mxu0 0.0
      %516 = vmatpush1.msra.mxu0 %v490
      %517 = vmatprep.subr.mxu0 0.0
      %518 = vmatpush1.msra.mxu0 %v491
      %519 = vmatprep.subr.mxu0 0.0
      %520 = vmatpush1.msra.mxu0 %v492
      %521 = vmatprep.subr.mxu0 0.0
      %522 = vmatpush1.msra.mxu0 %v493
      %523 = vmatprep.subr.mxu0 0.0
      %524 = vmatpush1.msra.mxu0 %v494
      %525 = vmatprep.subr.mxu0 0.0
      %526 = vmatpush1.msra.mxu0 %v495
      %527 = vmatprep.subr.mxu0 0.0
      %528 = vmatpush1.msra.mxu0 %v496
      %529 = vmatprep.subr.mxu0 0.0
      %530 = vmatpush1.msra.mxu0 0.0
      %531 = vmatprep.subr.mxu0 0.0
      %532 = vmatpush1.msra.mxu0 0.0
      %533 = vmatprep.subr.mxu0 0.0
      %534 = vmatpush1.msra.mxu0 0.0
      %535 = vmatprep.subr.mxu0 0.0
      %536 = vmatpush1.msra.mxu0 0.0
      %537 = vmatprep.subr.mxu0 0.0
      %538 = vmatpush1.msra.mxu0 0.0
      %539 = vmatprep.subr.mxu0 0.0
      %540 = vmatpush1.msra.mxu0 0.0
      %541 = vmatprep.subr.mxu0 0.0
      %542 = vmatpush1.msra.mxu0 0.0
      %543 = vmatprep.subr.mxu0 0.0
      %544 = vmatpush1.msra.mxu0 0.0
      %545 = vmatprep.subr.mxu0 0.0
      %546 = vmatpush1.msra.mxu0 0.0
      %547 = vmatprep.subr.mxu0 0.0
      %548 = vmatpush1.msra.mxu0 0.0
      %549 = vmatprep.subr.mxu0 0.0
      %550 = vmatpush1.msra.mxu0 0.0
      %551 = vmatprep.subr.mxu0 0.0
      %552 = vmatpush1.msra.mxu0 0.0
      %553 = vmatprep.subr.mxu0 0.0
      %554 = vmatpush1.msra.mxu0 0.0
      %555 = vmatprep.subr.mxu0 0.0
      %556 = vmatpush1.msra.mxu0 0.0
      %557 = vmatprep.subr.mxu0 0.0
      %558 = vmatpush1.msra.mxu0 0.0
      %559 = vmatprep.subr.mxu0 0.0
      %560 = vmatpush1.msra.mxu0 0.0
      %561 = vmatprep.mubr.f32.mxu0 0.0
      %562 = vmatmul.mubr.f32.gmra.mrb[0].mxu0 %v293
      %v563 = vpop.f32.mrb[0].mxu0
      %v564 = vadd.f32 0.0, %v563
      %v565 = vpop.f32.mrb[0].mxu0
      %566 = vmatprep.mubr.f32.mxu0 0.0
      %567 = vmatmul.mubr.f32.gmra.mrb[0].mxu0 %v296
      %v568 = vpop.f32.mrb[0].mxu0
      %v569 = vadd.f32 0.0, %v568
      %v570 = vpop.f32.mrb[0].mxu0
      %571 = vdwg.mxu0
      %v572 = vadd.f32 %v472, %v564
      %v573 = vadd.f32 %v477, %v569
      %v574 = vld [vmem:[%s2] sm:$0x1]
      %v576 = vlaneseq
      %v577 = vshrl.u32 %v576, 7
      %v578 = vsub.s32 0, %v577
      %v579 = vrot.slane %v574, %v578
      %v581 = vmul.f32 %v572, %v579
      %v582 = vmul.f32 %v573, %v579
      %v583 = vld [vmem:[%s3] sm:$0x1]
      %v585 = vlaneseq
      %v586 = vshrl.u32 %v585, 7
      %v587 = vsub.s32 0, %v586
      %v588 = vrot.slane %v583, %v587
      %v590 = vadd.f32 %v581, %v588
      %v591 = vadd.f32 %v582, %v588
      %v592 = vmax.f32 %v590, 0.0
      %v593 = vmax.f32 %v591, 0.0
      %v596 = vrot.slane %v592, 7
      %v597 = vrot.slane %v593, 7
      %v598 = vsel %vm283, %v596, %v597
      %v601 = vsel %vm283, 0.0, %v596
      %v602 = vrot.slane %v592, 1
      %v603 = vrot.slane %v593, 1
      %v604 = vsel %vm290, %v602, %v603
      %v607 = vsel %vm290, %v603, 0.0
      %v608 = vld [vmem:[%s4] sm:$0xff]
      %v609 = vld [vmem:[%s4 + $0x8] sm:$0xff]
      %v610 = vld [vmem:[%s4 + $0x10] sm:$0xff]
      %v611 = vld [vmem:[%s4 + $0x18] sm:$0xff]
      %v612 = vld [vmem:[%s4 + $0x20] sm:$0xff]
      %v613 = vld [vmem:[%s4 + $0x28] sm:$0xff]
      %v614 = vld [vmem:[%s4 + $0x30] sm:$0xff]
      %v615 = vld [vmem:[%s4 + $0x38] sm:$0xff]
      %v616 = vld [vmem:[%s4 + $0x40] sm:$0xff]
      %v617 = vld [vmem:[%s4 + $0x48] sm:$0xff]
      %v618 = vld [vmem:[%s4 + $0x50] sm:$0xff]
      %v619 = vld [vmem:[%s4 + $0x58] sm:$0xff]
      %v620 = vld [vmem:[%s4 + $0x60] sm:$0xff]
      %v621 = vld [vmem:[%s4 + $0x68] sm:$0xff]
      %v622 = vld [vmem:[%s4 + $0x70] sm:$0xff]
      %v623 = vld [vmem:[%s4 + $0x78] sm:$0xff]
      %s624 = scalar_lea.vmem %s4, 128
      %v625 = vld [vmem:[%s624] sm:$0xff]
      %v626 = vld [vmem:[%s624 + $0x8] sm:$0xff]
      %v627 = vld [vmem:[%s624 + $0x10] sm:$0xff]
      %v628 = vld [vmem:[%s624 + $0x18] sm:$0xff]
      %v629 = vld [vmem:[%s624 + $0x20] sm:$0xff]
      %v630 = vld [vmem:[%s624 + $0x28] sm:$0xff]
      %v631 = vld [vmem:[%s624 + $0x30] sm:$0xff]
      %v632 = vld [vmem:[%s624 + $0x38] sm:$0xff]
      %v633 = vld [vmem:[%s624 + $0x40] sm:$0xff]
      %v634 = vld [vmem:[%s624 + $0x48] sm:$0xff]
      %v635 = vld [vmem:[%s624 + $0x50] sm:$0xff]
      %v636 = vld [vmem:[%s624 + $0x58] sm:$0xff]
      %v637 = vld [vmem:[%s624 + $0x60] sm:$0xff]
      %v638 = vld [vmem:[%s624 + $0x68] sm:$0xff]
      %v639 = vld [vmem:[%s624 + $0x70] sm:$0xff]
      %v640 = vld [vmem:[%s624 + $0x78] sm:$0xff]
      %641 = vmatprep.subr.mxu0 0.0
      %642 = vmatpush1.msra.mxu0 %v625
      %643 = vmatprep.subr.mxu0 0.0
      %644 = vmatpush1.msra.mxu0 %v626
      %645 = vmatprep.subr.mxu0 0.0
      %646 = vmatpush1.msra.mxu0 %v627
      %647 = vmatprep.subr.mxu0 0.0
      %648 = vmatpush1.msra.mxu0 %v628
      %649 = vmatprep.subr.mxu0 0.0
      %650 = vmatpush1.msra.mxu0 %v629
      %651 = vmatprep.subr.mxu0 0.0
      %652 = vmatpush1.msra.mxu0 %v630
      %653 = vmatprep.subr.mxu0 0.0
      %654 = vmatpush1.msra.mxu0 %v631
      %655 = vmatprep.subr.mxu0 0.0
      %656 = vmatpush1.msra.mxu0 %v632
      %657 = vmatprep.subr.mxu0 0.0
      %658 = vmatpush1.msra.mxu0 %v633
      %659 = vmatprep.subr.mxu0 0.0
      %660 = vmatpush1.msra.mxu0 %v634
      %661 = vmatprep.subr.mxu0 0.0
      %662 = vmatpush1.msra.mxu0 %v635
      %663 = vmatprep.subr.mxu0 0.0
      %664 = vmatpush1.msra.mxu0 %v636
      %665 = vmatprep.subr.mxu0 0.0
      %666 = vmatpush1.msra.mxu0 %v637
      %667 = vmatprep.subr.mxu0 0.0
      %668 = vmatpush1.msra.mxu0 %v638
      %669 = vmatprep.subr.mxu0 0.0
      %670 = vmatpush1.msra.mxu0 %v639
      %671 = vmatprep.subr.mxu0 0.0
      %672 = vmatpush1.msra.mxu0 %v640
      %673 = vmatprep.subr.mxu0 0.0
      %674 = vmatpush1.msra.mxu0 0.0
      %675 = vmatprep.subr.mxu0 0.0
      %676 = vmatpush1.msra.mxu0 0.0
      %677 = vmatprep.subr.mxu0 0.0
      %678 = vmatpush1.msra.mxu0 0.0
      %679 = vmatprep.subr.mxu0 0.0
      %680 = vmatpush1.msra.mxu0 0.0
      %681 = vmatprep.subr.mxu0 0.0
      %682 = vmatpush1.msra.mxu0 0.0
      %683 = vmatprep.subr.mxu0 0.0
      %684 = vmatpush1.msra.mxu0 0.0
      %685 = vmatprep.subr.mxu0 0.0
      %686 = vmatpush1.msra.mxu0 0.0
      %687 = vmatprep.subr.mxu0 0.0
      %688 = vmatpush1.msra.mxu0 0.0
      %689 = vmatprep.subr.mxu0 0.0
      %690 = vmatpush1.msra.mxu0 0.0
      %691 = vmatprep.subr.mxu0 0.0
      %692 = vmatpush1.msra.mxu0 0.0
      %693 = vmatprep.subr.mxu0 0.0
      %694 = vmatpush1.msra.mxu0 0.0
      %695 = vmatprep.subr.mxu0 0.0
      %696 = vmatpush1.msra.mxu0 0.0
      %697 = vmatprep.subr.mxu0 0.0
      %698 = vmatpush1.msra.mxu0 0.0
      %699 = vmatprep.subr.mxu0 0.0
      %700 = vmatpush1.msra.mxu0 0.0
      %701 = vmatprep.subr.mxu0 0.0
      %702 = vmatpush1.msra.mxu0 0.0
      %703 = vmatprep.subr.mxu0 0.0
      %704 = vmatpush1.msra.mxu0 0.0
      %705 = vmatprep.mubr.f32.mxu0 0.0
      %706 = vmatmul.mubr.f32.gmra.mrb[0].mxu0 %v592
      %v707 = vpop.f32.mrb[0].mxu0
      %v708 = vadd.f32 0.0, %v707
      %v709 = vpop.f32.mrb[0].mxu0
      %710 = vmatprep.mubr.f32.mxu0 0.0
      %711 = vmatmul.mubr.f32.gmra.mrb[0].mxu0 %v593
      %v712 = vpop.f32.mrb[0].mxu0
      %v713 = vadd.f32 0.0, %v712
      %v714 = vpop.f32.mrb[0].mxu0
      %715 = vdwg.mxu0
      %716 = vmatprep.subr.mxu0 0.0
      %717 = vmatpush1.msra.mxu0 %v608
      %718 = vmatprep.subr.mxu0 0.0
      %719 = vmatpush1.msra.mxu0 %v609
      %720 = vmatprep.subr.mxu0 0.0
      %721 = vmatpush1.msra.mxu0 %v610
      %722 = vmatprep.subr.mxu0 0.0
      %723 = vmatpush1.msra.mxu0 %v611
      %724 = vmatprep.subr.mxu0 0.0
      %725 = vmatpush1.msra.mxu0 %v612
      %726 = vmatprep.subr.mxu0 0.0
      %727 = vmatpush1.msra.mxu0 %v613
      %728 = vmatprep.subr.mxu0 0.0
      %729 = vmatpush1.msra.mxu0 %v614
      %730 = vmatprep.subr.mxu0 0.0
      %731 = vmatpush1.msra.mxu0 %v615
      %732 = vmatprep.subr.mxu0 0.0
      %733 = vmatpush1.msra.mxu0 %v616
      %734 = vmatprep.subr.mxu0 0.0
      %735 = vmatpush1.msra.mxu0 %v617
      %736 = vmatprep.subr.mxu0 0.0
      %737 = vmatpush1.msra.mxu0 %v618
      %738 = vmatprep.subr.mxu0 0.0
      %739 = vmatpush1.msra.mxu0 %v619
      %740 = vmatprep.subr.mxu0 0.0
      %741 = vmatpush1.msra.mxu0 %v620
      %742 = vmatprep.subr.mxu0 0.0
      %743 = vmatpush1.msra.mxu0 %v621
      %744 = vmatprep.subr.mxu0 0.0
      %745 = vmatpush1.msra.mxu0 %v622
      %746 = vmatprep.subr.mxu0 0.0
      %747 = vmatpush1.msra.mxu0 %v623
      %748 = vmatprep.subr.mxu0 0.0
      %749 = vmatpush1.msra.mxu0 0.0
      %750 = vmatprep.subr.mxu0 0.0
      %751 = vmatpush1.msra.mxu0 0.0
      %752 = vmatprep.subr.mxu0 0.0
      %753 = vmatpush1.msra.mxu0 0.0
      %754 = vmatprep.subr.mxu0 0.0
      %755 = vmatpush1.msra.mxu0 0.0
      %756 = vmatprep.subr.mxu0 0.0
      %757 = vmatpush1.msra.mxu0 0.0
      %758 = vmatprep.subr.mxu0 0.0
      %759 = vmatpush1.msra.mxu0 0.0
      %760 = vmatprep.subr.mxu0 0.0
      %761 = vmatpush1.msra.mxu0 0.0
      %762 = vmatprep.subr.mxu0 0.0
      %763 = vmatpush1.msra.mxu0 0.0
      %764 = vmatprep.subr.mxu0 0.0
      %765 = vmatpush1.msra.mxu0 0.0
      %766 = vmatprep.subr.mxu0 0.0
      %767 = vmatpush1.msra.mxu0 0.0
      %768 = vmatprep.subr.mxu0 0.0
      %769 = vmatpush1.msra.mxu0 0.0
      %770 = vmatprep.subr.mxu0 0.0
      %771 = vmatpush1.msra.mxu0 0.0
      %772 = vmatprep.subr.mxu0 0.0
      %773 = vmatpush1.msra.mxu0 0.0
      %774 = vmatprep.subr.mxu0 0.0
      %775 = vmatpush1.msra.mxu0 0.0
      %776 = vmatprep.subr.mxu0 0.0
      %777 = vmatpush1.msra.mxu0 0.0
      %778 = vmatprep.subr.mxu0 0.0
      %779 = vmatpush1.msra.mxu0 0.0
      %780 = vmatprep.mubr.f32.mxu0 0.0
      %781 = vmatmul.mubr.f32.gmra.mrb[0].mxu0 %v601
      %v782 = vpop.f32.mrb[0].mxu0
      %v783 = vadd.f32 %v708, %v782
      %v784 = vpop.f32.mrb[0].mxu0
      %785 = vmatprep.mubr.f32.mxu0 0.0
      %786 = vmatmul.mubr.f32.gmra.mrb[0].mxu0 %v598
      %v787 = vpop.f32.mrb[0].mxu0
      %v788 = vadd.f32 %v713, %v787
      %v789 = vpop.f32.mrb[0].mxu0
      %790 = vdwg.mxu0
      %s791 = scalar_lea.vmem %s4, 256
      %v792 = vld [vmem:[%s791] sm:$0xff]
      %v793 = vld [vmem:[%s791 + $0x8] sm:$0xff]
      %v794 = vld [vmem:[%s791 + $0x10] sm:$0xff]
      %v795 = vld [vmem:[%s791 + $0x18] sm:$0xff]
      %v796 = vld [vmem:[%s791 + $0x20] sm:$0xff]
      %v797 = vld [vmem:[%s791 + $0x28] sm:$0xff]
      %v798 = vld [vmem:[%s791 + $0x30] sm:$0xff]
      %v799 = vld [vmem:[%s791 + $0x38] sm:$0xff]
      %v800 = vld [vmem:[%s791 + $0x40] sm:$0xff]
      %v801 = vld [vmem:[%s791 + $0x48] sm:$0xff]
      %v802 = vld [vmem:[%s791 + $0x50] sm:$0xff]
      %v803 = vld [vmem:[%s791 + $0x58] sm:$0xff]
      %v804 = vld [vmem:[%s791 + $0x60] sm:$0xff]
      %v805 = vld [vmem:[%s791 + $0x68] sm:$0xff]
      %v806 = vld [vmem:[%s791 + $0x70] sm:$0xff]
      %v807 = vld [vmem:[%s791 + $0x78] sm:$0xff]
      %808 = vmatprep.subr.mxu0 0.0
      %809 = vmatpush1.msra.mxu0 %v792
      %810 = vmatprep.subr.mxu0 0.0
      %811 = vmatpush1.msra.mxu0 %v793
      %812 = vmatprep.subr.mxu0 0.0
      %813 = vmatpush1.msra.mxu0 %v794
      %814 = vmatprep.subr.mxu0 0.0
      %815 = vmatpush1.msra.mxu0 %v795
      %816 = vmatprep.subr.mxu0 0.0
      %817 = vmatpush1.msra.mxu0 %v796
      %818 = vmatprep.subr.mxu0 0.0
      %819 = vmatpush1.msra.mxu0 %v797
      %820 = vmatprep.subr.mxu0 0.0
      %821 = vmatpush1.msra.mxu0 %v798
      %822 = vmatprep.subr.mxu0 0.0
      %823 = vmatpush1.msra.mxu0 %v799
      %824 = vmatprep.subr.mxu0 0.0
      %825 = vmatpush1.msra.mxu0 %v800
      %826 = vmatprep.subr.mxu0 0.0
      %827 = vmatpush1.msra.mxu0 %v801
      %828 = vmatprep.subr.mxu0 0.0
      %829 = vmatpush1.msra.mxu0 %v802
      %830 = vmatprep.subr.mxu0 0.0
      %831 = vmatpush1.msra.mxu0 %v803
      %832 = vmatprep.subr.mxu0 0.0
      %833 = vmatpush1.msra.mxu0 %v804
      %834 = vmatprep.subr.mxu0 0.0
      %835 = vmatpush1.msra.mxu0 %v805
      %836 = vmatprep.subr.mxu0 0.0
      %837 = vmatpush1.msra.mxu0 %v806
      %838 = vmatprep.subr.mxu0 0.0
      %839 = vmatpush1.msra.mxu0 %v807
      %840 = vmatprep.subr.mxu0 0.0
      %841 = vmatpush1.msra.mxu0 0.0
      %842 = vmatprep.subr.mxu0 0.0
      %843 = vmatpush1.msra.mxu0 0.0
      %844 = vmatprep.subr.mxu0 0.0
      %845 = vmatpush1.msra.mxu0 0.0
      %846 = vmatprep.subr.mxu0 0.0
      %847 = vmatpush1.msra.mxu0 0.0
      %848 = vmatprep.subr.mxu0 0.0
      %849 = vmatpush1.msra.mxu0 0.0
      %850 = vmatprep.subr.mxu0 0.0
      %851 = vmatpush1.msra.mxu0 0.0
      %852 = vmatprep.subr.mxu0 0.0
      %853 = vmatpush1.msra.mxu0 0.0
      %854 = vmatprep.subr.mxu0 0.0
      %855 = vmatpush1.msra.mxu0 0.0
      %856 = vmatprep.subr.mxu0 0.0
      %857 = vmatpush1.msra.mxu0 0.0
      %858 = vmatprep.subr.mxu0 0.0
      %859 = vmatpush1.msra.mxu0 0.0
      %860 = vmatprep.subr.mxu0 0.0
      %861 = vmatpush1.msra.mxu0 0.0
      %862 = vmatprep.subr.mxu0 0.0
      %863 = vmatpush1.msra.mxu0 0.0
      %864 = vmatprep.subr.mxu0 0.0
      %865 = vmatpush1.msra.mxu0 0.0
      %866 = vmatprep.subr.mxu0 0.0
      %867 = vmatpush1.msra.mxu0 0.0
      %868 = vmatprep.subr.mxu0 0.0
      %869 = vmatpush1.msra.mxu0 0.0
      %870 = vmatprep.subr.mxu0 0.0
      %871 = vmatpush1.msra.mxu0 0.0
      %872 = vmatprep.mubr.f32.mxu0 0.0
      %873 = vmatmul.mubr.f32.gmra.mrb[0].mxu0 %v604
      %v874 = vpop.f32.mrb[0].mxu0
      %v875 = vadd.f32 0.0, %v874
      %v876 = vpop.f32.mrb[0].mxu0
      %877 = vmatprep.mubr.f32.mxu0 0.0
      %878 = vmatmul.mubr.f32.gmra.mrb[0].mxu0 %v607
      %v879 = vpop.f32.mrb[0].mxu0
      %v880 = vadd.f32 0.0, %v879
      %v881 = vpop.f32.mrb[0].mxu0
      %882 = vdwg.mxu0
      %v883 = vadd.f32 %v783, %v875
      %v884 = vadd.f32 %v788, %v880
      %v885 = vld [vmem:[%s5] sm:$0x1]
      %v887 = vlaneseq
      %v888 = vshrl.u32 %v887, 7
      %v889 = vsub.s32 0, %v888
      %v890 = vrot.slane %v885, %v889
      %v892 = vmul.f32 %v883, %v890
      %v893 = vmul.f32 %v884, %v890
      %v894 = vld [vmem:[%s6] sm:$0x1]
      %v896 = vlaneseq
      %v897 = vshrl.u32 %v896, 7
      %v898 = vsub.s32 0, %v897
      %v899 = vrot.slane %v894, %v898
      %v901 = vadd.f32 %v892, %v899
      %v902 = vadd.f32 %v893, %v899
      %v903 = vadd.f32 %v901, %v279
      %v904 = vadd.f32 %v902, %v280
      %v905 = vmax.f32 %v903, 0.0
      %v906 = vmax.f32 %v904, 0.0
      %907 = vst [vmem:[%s278] sm:$0xff] %v905
      %908 = vst [vmem:[%s278 + $0x8] sm:$0xff] %v906
      %p909 = scmp.lt.s32.totalorder %s18, 1
      %s910 = scalar_select %p909, %s18, 1
      %s911 = smul.addr %s910, 2
      %s912 = smul.addr %s911, 8
      %s913 = scalar_lea.vmem %s7, %s912
      // Predicated region
      $region49: #{resblock_forward.1} parent=47 // pred_check
        %p914 = pneg %p188
      $region50: #{resblock_forward.1} parent=47 // pred_check_branch
        %916 = sbr.rel (%p914) target = $region52
      $region51: #{resblock_forward.1} parent=47 // pred_region
        _
      $region52: #{resblock_forward.1} parent=47 // pred_fallthru
        _
    $region48: #{resblock_forward.1} parent=5 // pred_fallthru
      _
    %p917 = scmp.le.s32.totalorder 2, %s13
    // Predicated region
    $region53: #{resblock_forward.1} parent=5 // pred_check
      %p918 = pneg %p917
    $region54: #{resblock_forward.1} parent=5 // pred_check_branch
      %920 = sbr.rel (%p918) target = $region56
    $region55: #{resblock_forward.1} parent=5 // pred_region
      %s921 = ssub.s32 %s13, 2
      // Predicated region
      $region57: #{resblock_forward.1} parent=55 // pred_check
        %p922 = pneg %p194
      $region58: #{resblock_forward.1} parent=55 // pred_check_branch
        %924 = sbr.rel (%p922) target = $region60
      $region59: #{resblock_forward.1} parent=55 // pred_region
        %p925 = scmp.lt.s32.totalorder %s19, 1
        %s926 = scalar_select %p925, %s19, 1
        %s927 = smul.addr %s926, 2
        %s928 = smul.addr %s927, 8
        %s929 = scalar_lea.vmem %s7, %s928
      $region60: #{resblock_forward.1} parent=55 // pred_fallthru
        _
    $region56: #{resblock_forward.1} parent=5 // pred_fallthru
      _
  $region6: #{resblock_forward.1} parent=0 // loop_footer
    %s17 = sadd.s32 1, %s13
  $region7: #{resblock_forward.1} parent=0 // loop_footer_branch
    %12 = sbr.rel target = $region3
  $region8: #{resblock_forward.1} parent=0 // loop_exit
    _

</llo_original>
